<compile_context>
chip_gen: v5e
topology: v5e:2x2
jax: 0.10.0
libtpu: 0.0.40
codegen_flags: <defaults>
</compile_context>

<pallas_src>
import functools

import jax
import jax.numpy as jnp
from jax.experimental import pallas as pl
from jax.experimental.pallas import tpu as pltpu


def gcn_layer_kernel(x_ref, s_ref, w_ref, b_ref, gamma_ref, beta_ref, *rest,
                     use_residual):
    # x_ref   : [N, Dp_in]  bf16, whole (needed fully for the lin matmul)
    # s_ref   : [N, N]      bf16, whole (normalized adjacency)
    # w_ref   : [tn, Dp_in] bf16, per-tile rows of W (PyTorch [out, in] layout)
    # b/gamma/beta_ref: [1, tn] f32
    # rest    : (xres_ref [N, tn] f32, o_ref) when use_residual else (o_ref,)
    if use_residual:
        xres_ref, o_ref = rest
    else:
        (o_ref,) = rest

    x = x_ref[...]
    w = w_ref[...]

    # MyGCNConv.lin (bias=False): x @ W.T, contracted on the in-channel axis
    # directly on the MXU (no wrapper-side transpose of W).
    xw = jax.lax.dot_general(
        x, w, dimension_numbers=(((1,), (1,)), ((), ())),
        preferred_element_type=jnp.float32)                       # [N, tn] f32
    # TODO(synk): u_quant_xw (learned-scale fake-quant of x@W) is not defined
    # in the provided source; treated as identity here.

    # propagate(aggr='add') with norm = D^{-1/2} A D^{-1/2}  ->  S @ xw.
    agg = jnp.dot(s_ref[...], xw.astype(jnp.bfloat16),
                  preferred_element_type=jnp.float32)              # [N, tn] f32

    # + bias
    h = agg + b_ref[...]

    # BatchNorm1d over the node (batch) axis: training-mode batch statistics,
    # biased variance, eps = 1e-5 (PyTorch default).  The node axis is whole
    # inside every feature tile, so the stats are exact.
    mean = jnp.mean(h, axis=0, keepdims=True)
    var = jnp.mean((h - mean) ** 2, axis=0, keepdims=True)
    h = (h - mean) * jax.lax.rsqrt(var + 1e-5)
    h = h * gamma_ref[...] + beta_ref[...]

    # activation = ReLU
    h = jnp.maximum(h, 0.0)

    # residual (branch is compiled out entirely when inactive)
    if use_residual:
        h = h + xres_ref[...]

    # dropout: eval-mode identity (deterministic forward)
    o_ref[...] = h


def _pad_axis(a, axis, multiple):
    pad = (-a.shape[axis]) % multiple
    if pad == 0:
        return a
    widths = [(0, 0)] * a.ndim
    widths[axis] = (0, pad)
    return jnp.pad(a, widths)


@functools.partial(jax.jit, static_argnames=("residual",))
def gcn_layer(x, s_norm, w, bias, gamma, beta, residual=True):
    """x: [N, Din] f32, s_norm: [N, N] f32, w: [Dout, Din] (PyTorch layout)."""
    n, d_in = x.shape
    d_out = w.shape[0]
    use_residual = bool(residual) and (d_in == d_out)   # mirrors GCNlayer.__init__

    # Lane-dense layout: pad feature axes to a multiple of 128.  Padded
    # columns stay exactly zero through BN/ReLU/residual and are sliced off.
    xp = _pad_axis(x, 1, 128)                                   # [N, Dp_in] f32
    wp = _pad_axis(_pad_axis(w, 0, 128), 1, 128)                # [Dp_out, Dp_in]
    bp = _pad_axis(bias.reshape(1, d_out), 1, 128)
    gp = _pad_axis(gamma.reshape(1, d_out), 1, 128)
    betap = _pad_axis(beta.reshape(1, d_out), 1, 128)
    dp_in = xp.shape[1]
    dp_out = wp.shape[0]

    # bf16 matmul operands, f32 accumulation (and f32 epilogue / residual).
    x_bf = xp.astype(jnp.bfloat16)
    s_bf = s_norm.astype(jnp.bfloat16)
    w_bf = wp.astype(jnp.bfloat16)

    # Feature-axis tile: biggest of {512, 256, 128} that divides padded Dout.
    tn = 128
    for cand in (512, 256):
        if dp_out % cand == 0:
            tn = cand
            break
    grid = (dp_out // tn,)

    in_specs = [
        pl.BlockSpec((n, dp_in), lambda j: (0, 0)),   # x (bf16, whole)
        pl.BlockSpec((n, n), lambda j: (0, 0)),       # S (bf16, whole)
        pl.BlockSpec((tn, dp_in), lambda j: (j, 0)),  # W out-feature tile
        pl.BlockSpec((1, tn), lambda j: (0, j)),      # bias
        pl.BlockSpec((1, tn), lambda j: (0, j)),      # gamma
        pl.BlockSpec((1, tn), lambda j: (0, j)),      # beta
    ]
    args = [x_bf, s_bf, w_bf, bp, gp, betap]
    if use_residual:
        in_specs.append(pl.BlockSpec((n, tn), lambda j: (0, j)))  # residual (f32)
        args.append(xp)

    out_p = pl.pallas_call(
        functools.partial(gcn_layer_kernel, use_residual=use_residual),
        out_shape=jax.ShapeDtypeStruct((n, dp_out), jnp.float32),
        grid=grid,
        in_specs=in_specs,
        out_specs=pl.BlockSpec((n, tn), lambda j: (0, j)),
        compiler_params=pltpu.CompilerParams(
            dimension_semantics=("parallel",),
            # Raise the scoped limit (v5e default is 16 MiB); actual usage for
            # the demo is far smaller, and bf16 S keeps large-N footprints in
            # check on v7x's 64 MiB physical VMEM.
            vmem_limit_bytes=64 * 1024 * 1024,
        ),
    )(*args)

    return out_p[:, :d_out]


def build_normalized_adjacency(edge_index, num_nodes):
    """Glue: replicates degree() / deg^{-0.5} / scatter-add of MessagePassing."""
    row, col = edge_index[0], edge_index[1]
    deg = jnp.zeros((num_nodes,), jnp.float32).at[col].add(1.0)
    deg_inv_sqrt = jnp.where(deg > 0, deg ** -0.5, 0.0)   # inf -> 0
    norm = deg_inv_sqrt[row] * deg_inv_sqrt[col]
    s = jnp.zeros((num_nodes, num_nodes), jnp.float32).at[col, row].add(norm)
    return s


def _reference(x, s, w, bias, gamma, beta):
    """Pure-JAX f32 reference of the same forward (for a sanity check)."""
    xw = x @ w.T
    h = s @ xw + bias[None, :]
    mean = jnp.mean(h, axis=0, keepdims=True)
    var = jnp.mean((h - mean) ** 2, axis=0, keepdims=True)
    h = (h - mean) * jax.lax.rsqrt(var + 1e-5)
    h = h * gamma[None, :] + beta[None, :]
    h = jnp.maximum(h, 0.0)
    return h + x


if __name__ == "__main__":
    key = jax.random.PRNGKey(0)
    kx, kw = jax.random.split(key)

    N = 16            # number of graph nodes
    D = 32            # in_dim == out_dim (so the residual branch is active)

    # node features
    x = jax.random.normal(kx, (N, D), dtype=jnp.float32)

    # bidirectional ring graph, edge_index shape [2, E]
    src = jnp.arange(N, dtype=jnp.int32)
    dst = (src + 1) % N
    edge_index = jnp.stack(
        [jnp.concatenate([src, dst]), jnp.concatenate([dst, src])], axis=0
    )

    # parameters (deterministic init, mirrors MyGCNConv.__init__ / BatchNorm1d)
    xavier_bound = (6.0 / (D + D)) ** 0.5
    w = jax.random.uniform(kw, (D, D), jnp.float32, -xavier_bound, xavier_bound)
    bias = jnp.zeros((D,), jnp.float32)       # torch.nn.init.zeros_
    gamma = jnp.ones((D,), jnp.float32)       # BN weight
    beta = jnp.zeros((D,), jnp.float32)       # BN bias

    s_norm = build_normalized_adjacency(edge_index, N)

    out = gcn_layer(x, s_norm, w, bias, gamma, beta)
    jax.block_until_ready(out)

    ref = _reference(x, s_norm, w, bias, gamma, beta)
    assert out.shape == (N, D)
    assert bool(jnp.all(jnp.isfinite(out)))
    # bf16 matmul operands with f32 accumulation -> loose tolerance.
    assert bool(jnp.allclose(out, ref, atol=0.12, rtol=0.12))
    print("KERNEL_OK")
</pallas_src>

<mosaic_0001>
module attributes {stable_mosaic.version = 11 : i64} {
  func.func @gcn_layer_kernel(%arg0: i32, %arg1: memref<16x128xbf16, #tpu.memory_space<vmem>>, %arg2: memref<16x16xbf16, #tpu.memory_space<vmem>>, %arg3: memref<128x128xbf16, #tpu.memory_space<vmem>>, %arg4: memref<1x128xf32, #tpu.memory_space<vmem>>, %arg5: memref<1x128xf32, #tpu.memory_space<vmem>>, %arg6: memref<1x128xf32, #tpu.memory_space<vmem>>, %arg7: memref<16x128xf32, #tpu.memory_space<vmem>>, %arg8: memref<16x128xf32, #tpu.memory_space<vmem>>) attributes {dimension_semantics = [#tpu.dimension_semantics<parallel>], iteration_bounds = array<i64: 1>, scalar_prefetch = 0 : i64, scratch_operands = 0 : i64, tpu.core_type = #tpu.core_type<tc>, window_params = [{pipeline_mode = #tpu.pipeline_mode<synchronous>, transform_indices = @transform_0, window_bounds = array<i64: 16, 128>}, {pipeline_mode = #tpu.pipeline_mode<synchronous>, transform_indices = @transform_1, window_bounds = array<i64: 16, 16>}, {transform_indices = @transform_2, window_bounds = array<i64: 128, 128>}, {transform_indices = @transform_3, window_bounds = array<i64: 1, 128>}, {transform_indices = @transform_4, window_bounds = array<i64: 1, 128>}, {transform_indices = @transform_5, window_bounds = array<i64: 1, 128>}, {transform_indices = @transform_6, window_bounds = array<i64: 16, 128>}, {transform_indices = @transform_7, window_bounds = array<i64: 16, 128>}]} {
    %c0 = arith.constant 0 : index
    %c0_0 = arith.constant 0 : index
    %0 = vector.load %arg1[%c0, %c0_0] : memref<16x128xbf16, #tpu.memory_space<vmem>>, vector<16x128xbf16>
    %c0_1 = arith.constant 0 : index
    %c0_2 = arith.constant 0 : index
    %1 = vector.load %arg3[%c0_1, %c0_2] : memref<128x128xbf16, #tpu.memory_space<vmem>>, vector<128x128xbf16>
    %cst = arith.constant dense<0.000000e+00> : vector<16x128xf32>
    %2 = tpu.matmul %0, %1, %cst {dimension_numbers = #tpu.dot_dimension_numbers<[1], [1], [0], [0], [0, 0, 1, 0], [], []>} : vector<16x128xbf16>, vector<128x128xbf16>, vector<16x128xf32> -> vector<16x128xf32>
    %c0_3 = arith.constant 0 : index
    %c0_4 = arith.constant 0 : index
    %3 = vector.load %arg2[%c0_3, %c0_4] : memref<16x16xbf16, #tpu.memory_space<vmem>>, vector<16x16xbf16>
    %4 = arith.truncf %2 : vector<16x128xf32> to vector<16x128xbf16>
    %cst_5 = arith.constant dense<0.000000e+00> : vector<16x128xf32>
    %5 = tpu.matmul %3, %4, %cst_5 {dimension_numbers = #tpu.dot_dimension_numbers<[1], [0], [0], [1], [0, 0, 1, 1], [], []>} : vector<16x16xbf16>, vector<16x128xbf16>, vector<16x128xf32> -> vector<16x128xf32>
    %c0_6 = arith.constant 0 : index
    %c0_7 = arith.constant 0 : index
    %6 = vector.load %arg4[%c0_6, %c0_7] : memref<1x128xf32, #tpu.memory_space<vmem>>, vector<1x128xf32>
    %7 = vector.broadcast %6 : vector<1x128xf32> to vector<16x128xf32>
    %8 = arith.addf %5, %7 : vector<16x128xf32>
    %cst_8 = arith.constant dense<0.000000e+00> : vector<128xf32>
    %9 = vector.multi_reduction <add>, %8, %cst_8 [0] : vector<16x128xf32> to vector<128xf32>
    %10 = vector.shape_cast %9 : vector<128xf32> to vector<1x128xf32>
    %cst_9 = arith.constant 1.600000e+01 : f32
    %11 = vector.broadcast %cst_9 : f32 to vector<1x128xf32>
    %12 = arith.divf %10, %11 : vector<1x128xf32>
    %13 = vector.broadcast %12 : vector<1x128xf32> to vector<16x128xf32>
    %14 = arith.subf %8, %13 : vector<16x128xf32>
    %15 = arith.mulf %14, %14 : vector<16x128xf32>
    %cst_10 = arith.constant dense<0.000000e+00> : vector<128xf32>
    %16 = vector.multi_reduction <add>, %15, %cst_10 [0] : vector<16x128xf32> to vector<128xf32>
    %17 = vector.shape_cast %16 : vector<128xf32> to vector<1x128xf32>
    %cst_11 = arith.constant 1.600000e+01 : f32
    %18 = vector.broadcast %cst_11 : f32 to vector<1x128xf32>
    %19 = arith.divf %17, %18 : vector<1x128xf32>
    %20 = vector.broadcast %12 : vector<1x128xf32> to vector<16x128xf32>
    %21 = arith.subf %8, %20 : vector<16x128xf32>
    %cst_12 = arith.constant 9.99999974E-6 : f32
    %22 = vector.broadcast %cst_12 : f32 to vector<1x128xf32>
    %23 = arith.addf %19, %22 : vector<1x128xf32>
    %24 = math.rsqrt %23 : vector<1x128xf32>
    %25 = vector.broadcast %24 : vector<1x128xf32> to vector<16x128xf32>
    %26 = arith.mulf %21, %25 : vector<16x128xf32>
    %c0_13 = arith.constant 0 : index
    %c0_14 = arith.constant 0 : index
    %27 = vector.load %arg5[%c0_13, %c0_14] : memref<1x128xf32, #tpu.memory_space<vmem>>, vector<1x128xf32>
    %28 = vector.broadcast %27 : vector<1x128xf32> to vector<16x128xf32>
    %29 = arith.mulf %26, %28 : vector<16x128xf32>
    %c0_15 = arith.constant 0 : index
    %c0_16 = arith.constant 0 : index
    %30 = vector.load %arg6[%c0_15, %c0_16] : memref<1x128xf32, #tpu.memory_space<vmem>>, vector<1x128xf32>
    %31 = vector.broadcast %30 : vector<1x128xf32> to vector<16x128xf32>
    %32 = arith.addf %29, %31 : vector<16x128xf32>
    %cst_17 = arith.constant 0.000000e+00 : f32
    %33 = vector.broadcast %cst_17 : f32 to vector<16x128xf32>
    %34 = arith.maximumf %32, %33 : vector<16x128xf32>
    %c0_18 = arith.constant 0 : index
    %c0_19 = arith.constant 0 : index
    %35 = vector.load %arg7[%c0_18, %c0_19] : memref<16x128xf32, #tpu.memory_space<vmem>>, vector<16x128xf32>
    %36 = arith.addf %34, %35 : vector<16x128xf32>
    %c0_20 = arith.constant 0 : index
    %c0_21 = arith.constant 0 : index
    %37 = vector.load %arg8[%c0_20, %c0_21] : memref<16x128xf32, #tpu.memory_space<vmem>>, vector<16x128xf32>
    tpu.vector_store %arg8[%c0_20, %c0_21], %36 {strides = array<i32>} : memref<16x128xf32, #tpu.memory_space<vmem>>, vector<16x128xf32>,
    return
  }
  func.func @transform_0(%arg0: i32) -> (i32, i32) {
    %c0_i32 = arith.constant 0 : i32
    %c0_i32_0 = arith.constant 0 : i32
    %c0_i32_1 = arith.constant 0 : i32
    return %c0_i32, %c0_i32_0 : i32, i32
  }
  func.func @transform_1(%arg0: i32) -> (i32, i32) {
    %c0_i32 = arith.constant 0 : i32
    %c0_i32_0 = arith.constant 0 : i32
    %c0_i32_1 = arith.constant 0 : i32
    return %c0_i32, %c0_i32_0 : i32, i32
  }
  func.func @transform_2(%arg0: i32) -> (i32, i32) {
    %c0_i32 = arith.constant 0 : i32
    %c0_i32_0 = arith.constant 0 : i32
    return %arg0, %c0_i32 : i32, i32
  }
  func.func @transform_3(%arg0: i32) -> (i32, i32) {
    %c0_i32 = arith.constant 0 : i32
    %c0_i32_0 = arith.constant 0 : i32
    return %c0_i32, %arg0 : i32, i32
  }
  func.func @transform_4(%arg0: i32) -> (i32, i32) {
    %c0_i32 = arith.constant 0 : i32
    %c0_i32_0 = arith.constant 0 : i32
    return %c0_i32, %arg0 : i32, i32
  }
  func.func @transform_5(%arg0: i32) -> (i32, i32) {
    %c0_i32 = arith.constant 0 : i32
    %c0_i32_0 = arith.constant 0 : i32
    return %c0_i32, %arg0 : i32, i32
  }
  func.func @transform_6(%arg0: i32) -> (i32, i32) {
    %c0_i32 = arith.constant 0 : i32
    %c0_i32_0 = arith.constant 0 : i32
    return %c0_i32, %arg0 : i32, i32
  }
  func.func @transform_7(%arg0: i32) -> (i32, i32) {
    %c0_i32 = arith.constant 0 : i32
    %c0_i32_0 = arith.constant 0 : i32
    return %c0_i32, %arg0 : i32, i32
  }
}

</mosaic_0001>

<llo_original>
// kernel: gcn_layer.1
$region0: #{gcn_layer.1}
  #allocation0 [shape = 'u32[]', space=smem, size = 0x4, offset = 0x4, fixed_abs, tag = 'smem constant byte address 0x4 - core index']
  #allocation1 [shape = 'u32[72,128]{1,0:T(1,128)}', space=vmem, size = 0x9000, scoped, tag = 'internal scratch']
  %s0 = inlined_call_operand.vmem [shape: bf16[16,128], index: 0, kind: input, shape index: {}]
  %s1 = inlined_call_operand.vmem [shape: bf16[16,16], index: 1, kind: input, shape index: {}]
  %s2 = inlined_call_operand.vmem [shape: bf16[128,128], index: 2, kind: input, shape index: {}]
  %s3 = inlined_call_operand.vmem [shape: f32[1,128], index: 3, kind: input, shape index: {}]
  %s4 = inlined_call_operand.vmem [shape: f32[1,128], index: 4, kind: input, shape index: {}]
  %s5 = inlined_call_operand.vmem [shape: f32[1,128], index: 5, kind: input, shape index: {}]
  %s6 = inlined_call_operand.vmem [shape: f32[16,128], index: 6, kind: input, shape index: {}]
  %s7 = inlined_call_operand.hbm [shape: f32[16,128], index: 7, kind: output, shape index: {}]
  %s8 = sld [smem:[#allocation0]]
  $region38: #{gcn_layer.1} parent=0
    _
  %s10 = ssub.s32 1, %s8
  %s11 = scalar_select 0, %s10, %s8
  $region1: #{gcn_layer.1} parent=0
    #allocation2 [shape = 'u8[8192]{0}', space=vmem, size = 0x2000, scoped, tag = 'output window, operand 0, single buffered']
    #allocation3 [shape = 's32[1]{0}', space=sflag, size = 0x4, scoped, tag = 'scoped memory for gcn_layer.1']
    %12 = vsyncpa [#allocation3], 0
    // Predicated region
    $region2: #{gcn_layer.1} parent=1 // pred_check
      _
    $region3: #{gcn_layer.1} parent=1 // pred_check_branch
      %14 = sbr.rel (0) target = $region5
    $region4: #{gcn_layer.1} parent=1 // pred_region
      _
    $region5: #{gcn_layer.1} parent=1 // pred_fallthru
      _
    // Predicated region
    $region6: #{gcn_layer.1} parent=1 // pred_check
      _
    $region7: #{gcn_layer.1} parent=1 // pred_check_branch
      %16 = sbr.rel (0) target = $region9
    $region8: #{gcn_layer.1} parent=1 // pred_region
      _
    $region9: #{gcn_layer.1} parent=1 // pred_fallthru
      _
    // Predicated region
    $region10: #{gcn_layer.1} parent=1 // pred_check
      _
    $region11: #{gcn_layer.1} parent=1 // pred_check_branch
      %18 = sbr.rel (0) target = $region13
    $region12: #{gcn_layer.1} parent=1 // pred_region
      _
    $region13: #{gcn_layer.1} parent=1 // pred_fallthru
      _
    // Predicated region
    $region14: #{gcn_layer.1} parent=1 // pred_check
      _
    $region15: #{gcn_layer.1} parent=1 // pred_check_branch
      %20 = sbr.rel (0) target = $region17
    $region16: #{gcn_layer.1} parent=1 // pred_region
      _
    $region17: #{gcn_layer.1} parent=1 // pred_fallthru
      _
    // Predicated region
    $region18: #{gcn_layer.1} parent=1 // pred_check
      _
    $region19: #{gcn_layer.1} parent=1 // pred_check_branch
      %22 = sbr.rel (0) target = $region21
    $region20: #{gcn_layer.1} parent=1 // pred_region
      _
    $region21: #{gcn_layer.1} parent=1 // pred_fallthru
      _
    // Predicated region
    $region22: #{gcn_layer.1} parent=1 // pred_check
      _
    $region23: #{gcn_layer.1} parent=1 // pred_check_branch
      %24 = sbr.rel (0) target = $region25
    $region24: #{gcn_layer.1} parent=1 // pred_region
      _
    $region25: #{gcn_layer.1} parent=1 // pred_fallthru
      _
    // Predicated region
    $region26: #{gcn_layer.1} parent=1 // pred_check
      _
    $region27: #{gcn_layer.1} parent=1 // pred_check_branch
      %26 = sbr.rel (0) target = $region29
    $region28: #{gcn_layer.1} parent=1 // pred_region
      _
    $region29: #{gcn_layer.1} parent=1 // pred_fallthru
      _
    %v28 = vld [vmem:[%s0] sm:$0xf]
    %v29 = vld [vmem:[%s0 + $0x4] sm:$0xf]
    %v30 = vld [vmem:[%s2] sm:$0xf]
    %v31 = vld [vmem:[%s2 + $0x4] sm:$0xf]
    %v32 = vld [vmem:[%s2 + $0x8] sm:$0xf]
    %v33 = vld [vmem:[%s2 + $0xc] sm:$0xf]
    %v34 = vld [vmem:[%s2 + $0x10] sm:$0xf]
    %v35 = vld [vmem:[%s2 + $0x14] sm:$0xf]
    %v36 = vld [vmem:[%s2 + $0x18] sm:$0xf]
    %v37 = vld [vmem:[%s2 + $0x1c] sm:$0xf]
    %v38 = vld [vmem:[%s2 + $0x20] sm:$0xf]
    %v39 = vld [vmem:[%s2 + $0x24] sm:$0xf]
    %v40 = vld [vmem:[%s2 + $0x28] sm:$0xf]
    %v41 = vld [vmem:[%s2 + $0x2c] sm:$0xf]
    %v42 = vld [vmem:[%s2 + $0x30] sm:$0xf]
    %v43 = vld [vmem:[%s2 + $0x34] sm:$0xf]
    %v44 = vld [vmem:[%s2 + $0x38] sm:$0xf]
    %v45 = vld [vmem:[%s2 + $0x3c] sm:$0xf]
    %v48 = vunpack.c.l.b16 %v28
    %v49 = vunpack.c.l.b16 %v29
    %v50 = vpack.c.b16 %v49, %v48
    %v68 = vunpack.c.l.b16 %v30
    %v69 = vunpack.c.l.b16 %v31
    %v70 = vunpack.c.l.b16 %v32
    %v71 = vunpack.c.l.b16 %v33
    %v72 = vunpack.c.l.b16 %v34
    %v73 = vunpack.c.l.b16 %v35
    %v74 = vunpack.c.l.b16 %v36
    %v75 = vunpack.c.l.b16 %v37
    %v76 = vunpack.c.l.b16 %v38
    %v77 = vunpack.c.l.b16 %v39
    %v78 = vunpack.c.l.b16 %v40
    %v79 = vunpack.c.l.b16 %v41
    %v80 = vunpack.c.l.b16 %v42
    %v81 = vunpack.c.l.b16 %v43
    %v82 = vunpack.c.l.b16 %v44
    %v83 = vunpack.c.l.b16 %v45
    %v84 = vpack.c.b16 %v69, %v68
    %v85 = vpack.c.b16 %v71, %v70
    %v86 = vpack.c.b16 %v73, %v72
    %v87 = vpack.c.b16 %v75, %v74
    %v88 = vpack.c.b16 %v77, %v76
    %v89 = vpack.c.b16 %v79, %v78
    %v90 = vpack.c.b16 %v81, %v80
    %v91 = vpack.c.b16 %v83, %v82
    %100 = vmatpush.bf16.xpose.msra.mxu0 %v91
    %101 = vmatpush.bf16.xpose.msra.mxu0 %v90
    %102 = vmatpush.bf16.xpose.msra.mxu0 %v89
    %103 = vmatpush.bf16.xpose.msra.mxu0 %v88
    %104 = vmatpush.bf16.xpose.msra.mxu0 %v87
    %105 = vmatpush.bf16.xpose.msra.mxu0 %v86
    %106 = vmatpush.bf16.xpose.msra.mxu0 %v85
    %107 = vmatpush.bf16.xpose.msra.mxu0 %v84
    %108 = vmatmul.bf16.gmra.mxu0 %v50
    %v109 = vpop.f32.mrf.mxu0
    %v110 = vadd.f32 0.0, %v109
    %v111 = vpop.f32.mrf.mxu0
    %v112 = vadd.f32 0.0, %v111
    %113 = vdwg.mxu0
    %v114 = vld [vmem:[%s1] sm:$0xf]
    %v115 = vld [vmem:[%s1 + $0x4] sm:$0xf]
    %v116 = vpack.c.bf16 %v112, %v110
    %v117 = vld [vmem:[%s3] sm:$0x1]
    %v119 = vperm.slane %v117, 0
    %v123 = vunpack.c.l.b16 %v114
    %v124 = vunpack.c.l.b16 %v115
    %v125 = vpack.c.b16 %v124, %v123
    %vm126 = vcmask 130048
    %v128 = vsel %vm126, %v125, 0
    %130 = vmatpush.bf16.msra.mxu0 0
    %131 = vmatpush.bf16.msra.mxu0 0
    %132 = vmatpush.bf16.msra.mxu0 0
    %133 = vmatpush.bf16.msra.mxu0 0
    %134 = vmatpush.bf16.msra.mxu0 0
    %135 = vmatpush.bf16.msra.mxu0 0
    %136 = vmatpush.bf16.msra.mxu0 0
    %137 = vmatpush.bf16.msra.mxu0 %v116
    %138 = vmatmul.bf16.gmra.mxu0 %v128
    %v139 = vpop.f32.mrf.mxu0
    %v140 = vadd.f32 %v119, %v139
    %v141 = vpop.f32.mrf.mxu0
    %v142 = vadd.f32 %v119, %v141
    %143 = vdwg.mxu0
    %v144 = vadd.f32 %v140, %v142
    %v145 = vrot.slane %v144, 4
    %v146 = vadd.f32 %v144, %v145
    %v147 = vrot.slane %v146, 2
    %v148 = vadd.f32 %v146, %v147
    %v149 = vrot.slane %v148, 1
    %v150 = vadd.f32 %v148, %v149
    %v151 = vrcp.pop 16.0
    %v152 = vmul.f32 16.0, %v151
    %v153 = vsub.f32 1.0, %v152
    %v154 = vmul.f32 %v151, %v153
    %v155 = vadd.f32 %v151, %v154
    %vm156 = vweird.f32 %v151
    %v157 = vsel %vm156, %v151, %v155
    %v158 = vmul.f32 %v150, %v157
    %v159 = vsub.f32 %v140, %v158
    %v160 = vsub.f32 %v142, %v158
    %v161 = vmul.f32 %v159, %v159
    %v162 = vmul.f32 %v160, %v160
    %v163 = vadd.f32 %v161, %v162
    %v164 = vrot.slane %v163, 4
    %v165 = vadd.f32 %v163, %v164
    %v166 = vrot.slane %v165, 2
    %v167 = vadd.f32 %v165, %v166
    %v168 = vrot.slane %v167, 1
    %v169 = vadd.f32 %v167, %v168
    %v170 = vmul.f32 %v169, %v157
    %v171 = vadd.f32 %v170, 1e-05
    %v172 = vrsqrt.pop %v171
    %v173 = vmul.f32 %v172, %v171
    %v174 = vmul.f32 %v173, %v172
    %v175 = vmul.f32 0.5, %v174
    %v176 = vsub.f32 1.5, %v175
    %v177 = vmul.f32 %v172, %v176
    %vm178 = vweird.f32 %v171
    %vm179 = vweird.f32 %v172
    %vm180 = vmor %vm178, %vm179
    %v181 = vsel %vm180, %v172, %v177
    %v182 = vmul.f32 %v159, %v181
    %v183 = vmul.f32 %v160, %v181
    %v184 = vld [vmem:[%s4] sm:$0x1]
    %v186 = vperm.slane %v184, 0
    %v188 = vmul.f32 %v182, %v186
    %v189 = vmul.f32 %v183, %v186
    %v190 = vld [vmem:[%s5] sm:$0x1]
    %v192 = vperm.slane %v190, 0
    %v194 = vadd.f32 %v188, %v192
    %v195 = vadd.f32 %v189, %v192
    %v196 = vmax.f32 %v194, 0.0
    %v197 = vmax.f32 %v195, 0.0
    %v198 = vld [vmem:[%s6] sm:$0xff]
    %v199 = vld [vmem:[%s6 + $0x8] sm:$0xff]
    %v200 = vadd.f32 %v196, %v198
    %v201 = vadd.f32 %v197, %v199
    %202 = vst [vmem:[#allocation2] sm:$0xff] %v200
    %203 = vst [vmem:[#allocation2 + $0x8] sm:$0xff] %v201
    // Predicated region
    $region30: #{gcn_layer.1} parent=1 // pred_check
      _
    $region31: #{gcn_layer.1} parent=1 // pred_check_branch
      %205 = sbr.rel (0) target = $region33
    $region32: #{gcn_layer.1} parent=1 // pred_region
      %207 = vsyncadd [#allocation3], 0
      %s208 = sshll.u32 [#allocation2], 4
      %s209 = int_to_ptr.vmem [resolvable:$true] %s208
      %s210 = sshll.u32 %s7, 4
      %s211 = int_to_ptr.hbm [resolvable:$true] %s210
      %216 = dma.vmem_to_hbm [thread:$0]  %s209, 256, %s211, [#allocation3], 128, 128, 8
    $region33: #{gcn_layer.1} parent=1 // pred_fallthru
      _
    // Predicated region
    $region34: #{gcn_layer.1} parent=1 // pred_check
      _
    $region35: #{gcn_layer.1} parent=1 // pred_check_branch
      %218 = sbr.rel (0) target = $region37
    $region36: #{gcn_layer.1} parent=1 // pred_region
      %220 = dma.done [#allocation3], 256
    $region37: #{gcn_layer.1} parent=1 // pred_fallthru
      _
    %221 = vsyncpa [#allocation3], 1

</llo_original>
